<compile_context>
chip_gen: v7x
topology: tpu7x:2x2x1
jax: 0.10.0
libtpu: 0.0.40
codegen_flags: <defaults>
</compile_context>

<pallas_src>
import jax
import jax.numpy as jnp
from jax.experimental import pallas as pl
from jax.experimental.pallas import tpu as pltpu

IN_FEATS = 267          # original input feature count
PAD_IN = 384            # 267 rounded up to a multiple of 128 (lane-dense)
HIDDEN = 36
N_CLASSES = 2


def _round_up(n, m):
    return ((n + m - 1) // m) * m


def _nn4_kernel(x_ref, w1_ref, ws_ref, bs_ref, o_ref):
    """Fused forward: 3x (Linear + ReLU) -> Linear -> log_softmax(dim=1).

    x_ref  : (TB, 384)  zero-padded input block
    w1_ref : (384, 36)  first-layer weight, K padded with zeros
    ws_ref : (3, 36, 36) stacked w2, w3, w4 (w4 zero-padded to 36 cols)
    bs_ref : (4, 36)    stacked b1..b4 (b4 zero-padded)
    o_ref  : (TB, 2)    log-probabilities
    """
    x = x_ref[...]

    h = jnp.dot(x, w1_ref[...], preferred_element_type=jnp.float32) + bs_ref[0:1, :]
    h = jnp.maximum(h, 0.0)

    h = jnp.dot(h, ws_ref[0], preferred_element_type=jnp.float32) + bs_ref[1:2, :]
    h = jnp.maximum(h, 0.0)

    h = jnp.dot(h, ws_ref[1], preferred_element_type=jnp.float32) + bs_ref[2:3, :]
    h = jnp.maximum(h, 0.0)

    logits = jnp.dot(h, ws_ref[2], preferred_element_type=jnp.float32) + bs_ref[3:4, :]
    logits = logits[:, 0:N_CLASSES]          # drop the zero-padded fake classes

    # Numerically stable log_softmax over the (real) class axis.
    m = jnp.max(logits, axis=-1, keepdims=True)
    shifted = logits - m
    lse = jnp.log(jnp.sum(jnp.exp(shifted), axis=-1, keepdims=True))
    o_ref[...] = (shifted - lse).astype(o_ref.dtype)


def prepare_params(params):
    """One-time preprocessing of PyTorch-convention (out,in) params.

    Returns 3 device buffers: padded w1 (384,36), stacked w2/w3/w4 (3,36,36),
    stacked biases (4,36).  Do this once at load time, not per forward call.
    """
    w1 = jnp.pad(params["w1"].T.astype(jnp.float32),
                 ((0, PAD_IN - IN_FEATS), (0, 0)))                      # (384, 36)
    ws = jnp.stack([
        params["w2"].T.astype(jnp.float32),                             # (36, 36)
        params["w3"].T.astype(jnp.float32),                             # (36, 36)
        jnp.pad(params["w4"].T.astype(jnp.float32),
                ((0, 0), (0, HIDDEN - N_CLASSES))),                     # (36, 36)
    ])                                                                   # (3, 36, 36)
    bs = jnp.stack([
        params["b1"].astype(jnp.float32),
        params["b2"].astype(jnp.float32),
        params["b3"].astype(jnp.float32),
        jnp.pad(params["b4"].astype(jnp.float32), (0, HIDDEN - N_CLASSES)),
    ])                                                                   # (4, 36)
    return {"w1": w1, "ws": ws, "bs": bs}


@jax.jit
def nn4_forward(x, prepared):
    """x: (B, 267) float32; prepared: output of prepare_params()."""
    B = x.shape[0]
    # Batch tile: large enough to amortize per-step overhead, small enough to
    # fit comfortably in v7x's 64 MiB VMEM (2 x TB x 384 x 4B ~= 3 MiB).
    TB = 1024 if B >= 1024 else _round_up(B, 8)
    B_pad = _round_up(B, TB)

    # Single pad op: batch tail (grid divisibility) + features 267 -> 384
    # (lane-dense x DMA, no masked K-tail on the first matmul).
    x_p = jnp.pad(x.astype(jnp.float32),
                  ((0, B_pad - B), (0, PAD_IN - IN_FEATS)))

    out = pl.pallas_call(
        _nn4_kernel,
        out_shape=jax.ShapeDtypeStruct((B_pad, N_CLASSES), jnp.float32),
        grid=(B_pad // TB,),
        in_specs=[
            pl.BlockSpec((TB, PAD_IN), lambda i: (i, 0)),          # x: tiled over batch
            pl.BlockSpec((PAD_IN, HIDDEN), lambda i: (0, 0)),      # w1: VMEM-resident
            pl.BlockSpec((3, HIDDEN, HIDDEN), lambda i: (0, 0, 0)),  # w2/w3/w4 stack
            pl.BlockSpec((4, HIDDEN), lambda i: (0, 0)),           # bias stack
        ],
        out_specs=pl.BlockSpec((TB, N_CLASSES), lambda i: (i, 0)),
        compiler_params=pltpu.CompilerParams(
            dimension_semantics=("parallel",),   # shard batch across TCs on v7x
        ),
    )(x_p, prepared["w1"], prepared["ws"], prepared["bs"])

    return out[:B]


def init_params(key):
    """Deterministic init mimicking nn.Linear's U(-1/sqrt(fan_in), 1/sqrt(fan_in))."""
    dims = [(IN_FEATS, HIDDEN), (HIDDEN, HIDDEN), (HIDDEN, HIDDEN), (HIDDEN, N_CLASSES)]
    params = {}
    keys = jax.random.split(key, 2 * len(dims))
    for i, (fan_in, fan_out) in enumerate(dims):
        bound = 1.0 / jnp.sqrt(jnp.float32(fan_in))
        # PyTorch convention: weight shape is (out_features, in_features).
        params[f"w{i+1}"] = jax.random.uniform(
            keys[2 * i], (fan_out, fan_in), jnp.float32, -bound, bound)
        params[f"b{i+1}"] = jax.random.uniform(
            keys[2 * i + 1], (fan_out,), jnp.float32, -bound, bound)
    return params


def nn4_reference(x, params):
    """Pure-JAX reference matching the PyTorch forward."""
    h = jnp.maximum(x @ params["w1"].T + params["b1"], 0.0)
    h = jnp.maximum(h @ params["w2"].T + params["b2"], 0.0)
    h = jnp.maximum(h @ params["w3"].T + params["b3"], 0.0)
    logits = h @ params["w4"].T + params["b4"]
    return jax.nn.log_softmax(logits, axis=-1)


if __name__ == "__main__":
    key = jax.random.PRNGKey(0)
    pkey, xkey = jax.random.split(key)

    params = init_params(pkey)
    prepared = prepare_params(params)                 # one-time preprocessing
    x = jax.random.normal(xkey, (8, IN_FEATS), jnp.float32)  # batch=8, features=267

    out = nn4_forward(x, prepared)
    jax.block_until_ready(out)

    # Sanity 1: log_softmax rows exponentiate-sum to 1.
    row_sums = jnp.sum(jnp.exp(out), axis=1)
    assert out.shape == (8, N_CLASSES)
    assert bool(jnp.all(jnp.abs(row_sums - 1.0) < 1e-5))

    # Sanity 2: matches the pure-JAX reference.
    ref = nn4_reference(x, params)
    assert bool(jnp.all(jnp.abs(out - ref) < 1e-4))

    print("KERNEL_OK")
</pallas_src>

<mosaic_0001>
module attributes {stable_mosaic.version = 11 : i64} {
  func.func @_nn4_kernel(%arg0: i32, %arg1: memref<8x384xf32, #tpu.memory_space<vmem>>, %arg2: memref<384x36xf32, #tpu.memory_space<vmem>>, %arg3: memref<3x36x36xf32, #tpu.memory_space<vmem>>, %arg4: memref<4x36xf32, #tpu.memory_space<vmem>>, %arg5: memref<8x2xf32, #tpu.memory_space<vmem>>) attributes {dimension_semantics = [#tpu.dimension_semantics<parallel>], iteration_bounds = array<i64: 1>, scalar_prefetch = 0 : i64, scratch_operands = 0 : i64, tpu.core_type = #tpu.core_type<tc>, window_params = [{transform_indices = @transform_0, window_bounds = array<i64: 8, 384>}, {pipeline_mode = #tpu.pipeline_mode<synchronous>, transform_indices = @transform_1, window_bounds = array<i64: 384, 36>}, {pipeline_mode = #tpu.pipeline_mode<synchronous>, transform_indices = @transform_2, window_bounds = array<i64: 3, 36, 36>}, {pipeline_mode = #tpu.pipeline_mode<synchronous>, transform_indices = @transform_3, window_bounds = array<i64: 4, 36>}, {transform_indices = @transform_4, window_bounds = array<i64: 8, 2>}]} {
    %c0 = arith.constant 0 : index
    %c0_0 = arith.constant 0 : index
    %0 = vector.load %arg1[%c0, %c0_0] : memref<8x384xf32, #tpu.memory_space<vmem>>, vector<8x384xf32>
    %c0_1 = arith.constant 0 : index
    %c0_2 = arith.constant 0 : index
    %1 = vector.load %arg2[%c0_1, %c0_2] : memref<384x36xf32, #tpu.memory_space<vmem>>, vector<384x36xf32>
    %cst = arith.constant dense<0.000000e+00> : vector<8x36xf32>
    %2 = tpu.matmul %0, %1, %cst {dimension_numbers = #tpu.dot_dimension_numbers<[1], [0], [0], [1], [0, 0, 1, 1], [], []>} : vector<8x384xf32>, vector<384x36xf32>, vector<8x36xf32> -> vector<8x36xf32>
    %c0_3 = arith.constant 0 : index
    %c0_4 = arith.constant 0 : index
    %3 = vector.load %arg4[%c0_3, %c0_4] : memref<4x36xf32, #tpu.memory_space<vmem>>, vector<1x36xf32>
    %4 = vector.broadcast %3 : vector<1x36xf32> to vector<8x36xf32>
    %5 = arith.addf %2, %4 : vector<8x36xf32>
    %cst_5 = arith.constant 0.000000e+00 : f32
    %6 = vector.broadcast %cst_5 : f32 to vector<8x36xf32>
    %7 = arith.maximumf %5, %6 : vector<8x36xf32>
    %c0_6 = arith.constant 0 : index
    %c0_7 = arith.constant 0 : index
    %c0_8 = arith.constant 0 : index
    %8 = vector.load %arg3[%c0_6, %c0_7, %c0_8] : memref<3x36x36xf32, #tpu.memory_space<vmem>>, vector<1x36x36xf32>
    %9 = vector.shape_cast %8 : vector<1x36x36xf32> to vector<36x36xf32>
    %cst_9 = arith.constant dense<0.000000e+00> : vector<8x36xf32>
    %10 = tpu.matmul %7, %9, %cst_9 {dimension_numbers = #tpu.dot_dimension_numbers<[1], [0], [0], [1], [0, 0, 1, 1], [], []>} : vector<8x36xf32>, vector<36x36xf32>, vector<8x36xf32> -> vector<8x36xf32>
    %c1 = arith.constant 1 : index
    %c0_10 = arith.constant 0 : index
    %11 = vector.load %arg4[%c1, %c0_10] : memref<4x36xf32, #tpu.memory_space<vmem>>, vector<1x36xf32>
    %12 = vector.broadcast %11 : vector<1x36xf32> to vector<8x36xf32>
    %13 = arith.addf %10, %12 : vector<8x36xf32>
    %cst_11 = arith.constant 0.000000e+00 : f32
    %14 = vector.broadcast %cst_11 : f32 to vector<8x36xf32>
    %15 = arith.maximumf %13, %14 : vector<8x36xf32>
    %c1_12 = arith.constant 1 : index
    %c0_13 = arith.constant 0 : index
    %c0_14 = arith.constant 0 : index
    %16 = vector.load %arg3[%c1_12, %c0_13, %c0_14] : memref<3x36x36xf32, #tpu.memory_space<vmem>>, vector<1x36x36xf32>
    %17 = vector.shape_cast %16 : vector<1x36x36xf32> to vector<36x36xf32>
    %cst_15 = arith.constant dense<0.000000e+00> : vector<8x36xf32>
    %18 = tpu.matmul %15, %17, %cst_15 {dimension_numbers = #tpu.dot_dimension_numbers<[1], [0], [0], [1], [0, 0, 1, 1], [], []>} : vector<8x36xf32>, vector<36x36xf32>, vector<8x36xf32> -> vector<8x36xf32>
    %c2 = arith.constant 2 : index
    %c0_16 = arith.constant 0 : index
    %19 = vector.load %arg4[%c2, %c0_16] : memref<4x36xf32, #tpu.memory_space<vmem>>, vector<1x36xf32>
    %20 = vector.broadcast %19 : vector<1x36xf32> to vector<8x36xf32>
    %21 = arith.addf %18, %20 : vector<8x36xf32>
    %cst_17 = arith.constant 0.000000e+00 : f32
    %22 = vector.broadcast %cst_17 : f32 to vector<8x36xf32>
    %23 = arith.maximumf %21, %22 : vector<8x36xf32>
    %c2_18 = arith.constant 2 : index
    %c0_19 = arith.constant 0 : index
    %c0_20 = arith.constant 0 : index
    %24 = vector.load %arg3[%c2_18, %c0_19, %c0_20] : memref<3x36x36xf32, #tpu.memory_space<vmem>>, vector<1x36x36xf32>
    %25 = vector.shape_cast %24 : vector<1x36x36xf32> to vector<36x36xf32>
    %cst_21 = arith.constant dense<0.000000e+00> : vector<8x36xf32>
    %26 = tpu.matmul %23, %25, %cst_21 {dimension_numbers = #tpu.dot_dimension_numbers<[1], [0], [0], [1], [0, 0, 1, 1], [], []>} : vector<8x36xf32>, vector<36x36xf32>, vector<8x36xf32> -> vector<8x36xf32>
    %c3 = arith.constant 3 : index
    %c0_22 = arith.constant 0 : index
    %27 = vector.load %arg4[%c3, %c0_22] : memref<4x36xf32, #tpu.memory_space<vmem>>, vector<1x36xf32>
    %28 = vector.broadcast %27 : vector<1x36xf32> to vector<8x36xf32>
    %29 = arith.addf %26, %28 : vector<8x36xf32>
    %30 = vector.extract_strided_slice %29 {offsets = [0, 0], sizes = [8, 2], strides = [1, 1]} : vector<8x36xf32> to vector<8x2xf32>
    %cst_23 = arith.constant dense<0xFF800000> : vector<8xf32>
    %31 = vector.multi_reduction <maximumf>, %30, %cst_23 [1] : vector<8x2xf32> to vector<8xf32>
    %32 = vector.shape_cast %31 : vector<8xf32> to vector<8x1xf32>
    %33 = vector.broadcast %32 : vector<8x1xf32> to vector<8x2xf32>
    %34 = arith.subf %30, %33 : vector<8x2xf32>
    %35 = math.exp %34 : vector<8x2xf32>
    %cst_24 = arith.constant dense<0.000000e+00> : vector<8xf32>
    %36 = vector.multi_reduction <add>, %35, %cst_24 [1] : vector<8x2xf32> to vector<8xf32>
    %37 = vector.shape_cast %36 : vector<8xf32> to vector<8x1xf32>
    %38 = math.log %37 : vector<8x1xf32>
    %39 = vector.broadcast %38 : vector<8x1xf32> to vector<8x2xf32>
    %40 = arith.subf %34, %39 : vector<8x2xf32>
    %c0_25 = arith.constant 0 : index
    %c0_26 = arith.constant 0 : index
    %41 = vector.load %arg5[%c0_25, %c0_26] : memref<8x2xf32, #tpu.memory_space<vmem>>, vector<8x2xf32>
    tpu.vector_store %arg5[%c0_25, %c0_26], %40 {strides = array<i32>} : memref<8x2xf32, #tpu.memory_space<vmem>>, vector<8x2xf32>,
    return
  }
  func.func @transform_0(%arg0: i32) -> (i32, i32) {
    %c0_i32 = arith.constant 0 : i32
    %c0_i32_0 = arith.constant 0 : i32
    return %arg0, %c0_i32 : i32, i32
  }
  func.func @transform_1(%arg0: i32) -> (i32, i32) {
    %c0_i32 = arith.constant 0 : i32
    %c0_i32_0 = arith.constant 0 : i32
    %c0_i32_1 = arith.constant 0 : i32
    return %c0_i32, %c0_i32_0 : i32, i32
  }
  func.func @transform_2(%arg0: i32) -> (i32, i32, i32) {
    %c0_i32 = arith.constant 0 : i32
    %c0_i32_0 = arith.constant 0 : i32
    %c0_i32_1 = arith.constant 0 : i32
    %c0_i32_2 = arith.constant 0 : i32
    return %c0_i32, %c0_i32_0, %c0_i32_1 : i32, i32, i32
  }
  func.func @transform_3(%arg0: i32) -> (i32, i32) {
    %c0_i32 = arith.constant 0 : i32
    %c0_i32_0 = arith.constant 0 : i32
    %c0_i32_1 = arith.constant 0 : i32
    return %c0_i32, %c0_i32_0 : i32, i32
  }
  func.func @transform_4(%arg0: i32) -> (i32, i32) {
    %c0_i32 = arith.constant 0 : i32
    %c0_i32_0 = arith.constant 0 : i32
    return %arg0, %c0_i32 : i32, i32
  }
}

</mosaic_0001>

<llo_original>
// kernel: nn4_forward.1
$region0: #{nn4_forward.1}
  #allocation0 [shape = 'u32[]', space=smem, size = 0x4, offset = 0x4, fixed_abs, tag = 'smem constant byte address 0x4 - core index']
  #allocation1 [shape = 'u32[144,128]{1,0:T(1,128)}', space=vmem, size = 0x12000, scoped, tag = 'internal scratch']
  %s0 = inlined_call_operand.vmem [shape: f32[8,384], index: 0, kind: input, shape index: {}]
  %s1 = inlined_call_operand.vmem [shape: f32[384,36], index: 1, kind: input, shape index: {}]
  %s2 = inlined_call_operand.vmem [shape: f32[3,36,36], index: 2, kind: input, shape index: {}]
  %s3 = inlined_call_operand.vmem [shape: f32[4,36], index: 3, kind: input, shape index: {}]
  %s4 = inlined_call_operand.vmem [shape: f32[8,2], index: 4, kind: output, shape index: {}]
  %s5 = sld [smem:[#allocation0]]
  $region26: #{nn4_forward.1} parent=0
    _
  %s7 = ssub.s32 1, %s5
  %s8 = scalar_select 0, %s7, %s5
  // Predicated region
  $region2: #{nn4_forward.1} parent=0 // pred_check
    _
  $region3: #{nn4_forward.1} parent=0 // pred_check_branch
    %10 = sbr.rel (0) target = $region5
  $region4: #{nn4_forward.1} parent=0 // pred_region
    _
  $region5: #{nn4_forward.1} parent=0 // pred_fallthru
    _
  // Predicated region
  $region6: #{nn4_forward.1} parent=0 // pred_check
    _
  $region7: #{nn4_forward.1} parent=0 // pred_check_branch
    %12 = sbr.rel (0) target = $region9
  $region8: #{nn4_forward.1} parent=0 // pred_region
    _
  $region9: #{nn4_forward.1} parent=0 // pred_fallthru
    _
  // Predicated region
  $region10: #{nn4_forward.1} parent=0 // pred_check
    _
  $region11: #{nn4_forward.1} parent=0 // pred_check_branch
    %14 = sbr.rel (0) target = $region13
  $region12: #{nn4_forward.1} parent=0 // pred_region
    _
  $region13: #{nn4_forward.1} parent=0 // pred_fallthru
    _
  // Predicated region
  $region14: #{nn4_forward.1} parent=0 // pred_check
    _
  $region15: #{nn4_forward.1} parent=0 // pred_check_branch
    %16 = sbr.rel (0) target = $region17
  $region16: #{nn4_forward.1} parent=0 // pred_region
    _
  $region17: #{nn4_forward.1} parent=0 // pred_fallthru
    _
  %v17 = vld [vmem:[%s0] sm:$0xff]
  %v18 = vld [vmem:[%s0 + $0x8] sm:$0xff]
  %v19 = vld [vmem:[%s0 + $0x10] sm:$0xff]
  %v20 = vld [vmem:[%s1] sm:$0xff]
  %v21 = vld [vmem:[%s1 + $0x8] sm:$0xff]
  %v22 = vld [vmem:[%s1 + $0x10] sm:$0xff]
  %v23 = vld [vmem:[%s1 + $0x18] sm:$0xff]
  %v24 = vld [vmem:[%s1 + $0x20] sm:$0xff]
  %v25 = vld [vmem:[%s1 + $0x28] sm:$0xff]
  %v26 = vld [vmem:[%s1 + $0x30] sm:$0xff]
  %v27 = vld [vmem:[%s1 + $0x38] sm:$0xff]
  %v28 = vld [vmem:[%s1 + $0x40] sm:$0xff]
  %v29 = vld [vmem:[%s1 + $0x48] sm:$0xff]
  %v30 = vld [vmem:[%s1 + $0x50] sm:$0xff]
  %v31 = vld [vmem:[%s1 + $0x58] sm:$0xff]
  %v32 = vld [vmem:[%s1 + $0x60] sm:$0xff]
  %v33 = vld [vmem:[%s1 + $0x68] sm:$0xff]
  %v34 = vld [vmem:[%s1 + $0x70] sm:$0xff]
  %v35 = vld [vmem:[%s1 + $0x78] sm:$0xff]
  %v36 = vld [vmem:[%s1 + $0x80] sm:$0xff]
  %v37 = vld [vmem:[%s1 + $0x88] sm:$0xff]
  %v38 = vld [vmem:[%s1 + $0x90] sm:$0xff]
  %v39 = vld [vmem:[%s1 + $0x98] sm:$0xff]
  %v40 = vld [vmem:[%s1 + $0xa0] sm:$0xff]
  %v41 = vld [vmem:[%s1 + $0xa8] sm:$0xff]
  %v42 = vld [vmem:[%s1 + $0xb0] sm:$0xff]
  %v43 = vld [vmem:[%s1 + $0xb8] sm:$0xff]
  %v44 = vld [vmem:[%s1 + $0xc0] sm:$0xff]
  %v45 = vld [vmem:[%s1 + $0xc8] sm:$0xff]
  %v46 = vld [vmem:[%s1 + $0xd0] sm:$0xff]
  %v47 = vld [vmem:[%s1 + $0xd8] sm:$0xff]
  %v48 = vld [vmem:[%s1 + $0xe0] sm:$0xff]
  %v49 = vld [vmem:[%s1 + $0xe8] sm:$0xff]
  %v50 = vld [vmem:[%s1 + $0xf0] sm:$0xff]
  %v51 = vld [vmem:[%s1 + $0xf8] sm:$0xff]
  %v52 = vld [vmem:[%s1 + $0x100] sm:$0xff]
  %v53 = vld [vmem:[%s1 + $0x108] sm:$0xff]
  %v54 = vld [vmem:[%s1 + $0x110] sm:$0xff]
  %v55 = vld [vmem:[%s1 + $0x118] sm:$0xff]
  %v56 = vld [vmem:[%s1 + $0x120] sm:$0xff]
  %v57 = vld [vmem:[%s1 + $0x128] sm:$0xff]
  %v58 = vld [vmem:[%s1 + $0x130] sm:$0xff]
  %v59 = vld [vmem:[%s1 + $0x138] sm:$0xff]
  %v60 = vld [vmem:[%s1 + $0x140] sm:$0xff]
  %v61 = vld [vmem:[%s1 + $0x148] sm:$0xff]
  %v62 = vld [vmem:[%s1 + $0x150] sm:$0xff]
  %v63 = vld [vmem:[%s1 + $0x158] sm:$0xff]
  %v64 = vld [vmem:[%s1 + $0x160] sm:$0xff]
  %v65 = vld [vmem:[%s1 + $0x168] sm:$0xff]
  %v66 = vld [vmem:[%s1 + $0x170] sm:$0xff]
  %v67 = vld [vmem:[%s1 + $0x178] sm:$0xff]
  %v68 = vld [vmem:[%s3] sm:$0x1]
  %v69 = vlaneseq
  %v70 = vshrl.u32 %v69, 7
  %v71 = vsub.s32 0, %v70
  %v72 = vrot.slane %v68, %v71
  %73 = vmatprep.subr.mxu0 0.0
  %74 = vmatpush1.msra.mxu0 %v20
  %75 = vmatprep.subr.mxu0 0.0
  %76 = vmatpush1.msra.mxu0 %v21
  %77 = vmatprep.subr.mxu0 0.0
  %78 = vmatpush1.msra.mxu0 %v22
  %79 = vmatprep.subr.mxu0 0.0
  %80 = vmatpush1.msra.mxu0 %v23
  %81 = vmatprep.subr.mxu0 0.0
  %82 = vmatpush1.msra.mxu0 %v24
  %83 = vmatprep.subr.mxu0 0.0
  %84 = vmatpush1.msra.mxu0 %v25
  %85 = vmatprep.subr.mxu0 0.0
  %86 = vmatpush1.msra.mxu0 %v26
  %87 = vmatprep.subr.mxu0 0.0
  %88 = vmatpush1.msra.mxu0 %v27
  %89 = vmatprep.subr.mxu0 0.0
  %90 = vmatpush1.msra.mxu0 %v28
  %91 = vmatprep.subr.mxu0 0.0
  %92 = vmatpush1.msra.mxu0 %v29
  %93 = vmatprep.subr.mxu0 0.0
  %94 = vmatpush1.msra.mxu0 %v30
  %95 = vmatprep.subr.mxu0 0.0
  %96 = vmatpush1.msra.mxu0 %v31
  %97 = vmatprep.subr.mxu0 0.0
  %98 = vmatpush1.msra.mxu0 %v32
  %99 = vmatprep.subr.mxu0 0.0
  %100 = vmatpush1.msra.mxu0 %v33
  %101 = vmatprep.subr.mxu0 0.0
  %102 = vmatpush1.msra.mxu0 %v34
  %103 = vmatprep.subr.mxu0 0.0
  %104 = vmatpush1.msra.mxu0 %v35
  %105 = vmatprep.subr.mxu0 0.0
  %106 = vmatpush1.msra.mxu0 %v36
  %107 = vmatprep.subr.mxu0 0.0
  %108 = vmatpush1.msra.mxu0 %v37
  %109 = vmatprep.subr.mxu0 0.0
  %110 = vmatpush1.msra.mxu0 %v38
  %111 = vmatprep.subr.mxu0 0.0
  %112 = vmatpush1.msra.mxu0 %v39
  %113 = vmatprep.subr.mxu0 0.0
  %114 = vmatpush1.msra.mxu0 %v40
  %115 = vmatprep.subr.mxu0 0.0
  %116 = vmatpush1.msra.mxu0 %v41
  %117 = vmatprep.subr.mxu0 0.0
  %118 = vmatpush1.msra.mxu0 %v42
  %119 = vmatprep.subr.mxu0 0.0
  %120 = vmatpush1.msra.mxu0 %v43
  %121 = vmatprep.subr.mxu0 0.0
  %122 = vmatpush1.msra.mxu0 %v44
  %123 = vmatprep.subr.mxu0 0.0
  %124 = vmatpush1.msra.mxu0 %v45
  %125 = vmatprep.subr.mxu0 0.0
  %126 = vmatpush1.msra.mxu0 %v46
  %127 = vmatprep.subr.mxu0 0.0
  %128 = vmatpush1.msra.mxu0 %v47
  %129 = vmatprep.subr.mxu0 0.0
  %130 = vmatpush1.msra.mxu0 %v48
  %131 = vmatprep.subr.mxu0 0.0
  %132 = vmatpush1.msra.mxu0 %v49
  %133 = vmatprep.subr.mxu0 0.0
  %134 = vmatpush1.msra.mxu0 %v50
  %135 = vmatprep.subr.mxu0 0.0
  %136 = vmatpush1.msra.mxu0 %v51
  %137 = vmatprep.mubr.f32.mxu0 %v18
  %138 = vmatmul.mubr.f32.gmra.mrb[0].mxu0 %v17
  %v139 = vpop.f32.mrb[0].mxu0
  %v140 = vadd.f32 %v72, %v139
  %v141 = vpop.f32.mrb[0].mxu0
  %142 = vdwg.mxu0
  %143 = vmatprep.subr.mxu0 0.0
  %144 = vmatpush1.msra.mxu0 %v52
  %145 = vmatprep.subr.mxu0 0.0
  %146 = vmatpush1.msra.mxu0 %v53
  %147 = vmatprep.subr.mxu0 0.0
  %148 = vmatpush1.msra.mxu0 %v54
  %149 = vmatprep.subr.mxu0 0.0
  %150 = vmatpush1.msra.mxu0 %v55
  %151 = vmatprep.subr.mxu0 0.0
  %152 = vmatpush1.msra.mxu0 %v56
  %153 = vmatprep.subr.mxu0 0.0
  %154 = vmatpush1.msra.mxu0 %v57
  %155 = vmatprep.subr.mxu0 0.0
  %156 = vmatpush1.msra.mxu0 %v58
  %157 = vmatprep.subr.mxu0 0.0
  %158 = vmatpush1.msra.mxu0 %v59
  %159 = vmatprep.subr.mxu0 0.0
  %160 = vmatpush1.msra.mxu0 %v60
  %161 = vmatprep.subr.mxu0 0.0
  %162 = vmatpush1.msra.mxu0 %v61
  %163 = vmatprep.subr.mxu0 0.0
  %164 = vmatpush1.msra.mxu0 %v62
  %165 = vmatprep.subr.mxu0 0.0
  %166 = vmatpush1.msra.mxu0 %v63
  %167 = vmatprep.subr.mxu0 0.0
  %168 = vmatpush1.msra.mxu0 %v64
  %169 = vmatprep.subr.mxu0 0.0
  %170 = vmatpush1.msra.mxu0 %v65
  %171 = vmatprep.subr.mxu0 0.0
  %172 = vmatpush1.msra.mxu0 %v66
  %173 = vmatprep.subr.mxu0 0.0
  %174 = vmatpush1.msra.mxu0 %v67
  %175 = vmatprep.subr.mxu0 0.0
  %176 = vmatpush1.msra.mxu0 0.0
  %177 = vmatprep.subr.mxu0 0.0
  %178 = vmatpush1.msra.mxu0 0.0
  %179 = vmatprep.subr.mxu0 0.0
  %180 = vmatpush1.msra.mxu0 0.0
  %181 = vmatprep.subr.mxu0 0.0
  %182 = vmatpush1.msra.mxu0 0.0
  %183 = vmatprep.subr.mxu0 0.0
  %184 = vmatpush1.msra.mxu0 0.0
  %185 = vmatprep.subr.mxu0 0.0
  %186 = vmatpush1.msra.mxu0 0.0
  %187 = vmatprep.subr.mxu0 0.0
  %188 = vmatpush1.msra.mxu0 0.0
  %189 = vmatprep.subr.mxu0 0.0
  %190 = vmatpush1.msra.mxu0 0.0
  %191 = vmatprep.subr.mxu0 0.0
  %192 = vmatpush1.msra.mxu0 0.0
  %193 = vmatprep.subr.mxu0 0.0
  %194 = vmatpush1.msra.mxu0 0.0
  %195 = vmatprep.subr.mxu0 0.0
  %196 = vmatpush1.msra.mxu0 0.0
  %197 = vmatprep.subr.mxu0 0.0
  %198 = vmatpush1.msra.mxu0 0.0
  %199 = vmatprep.subr.mxu0 0.0
  %200 = vmatpush1.msra.mxu0 0.0
  %201 = vmatprep.subr.mxu0 0.0
  %202 = vmatpush1.msra.mxu0 0.0
  %203 = vmatprep.subr.mxu0 0.0
  %204 = vmatpush1.msra.mxu0 0.0
  %205 = vmatprep.subr.mxu0 0.0
  %206 = vmatpush1.msra.mxu0 0.0
  %207 = vmatprep.mubr.f32.mxu0 0.0
  %208 = vmatmul.mubr.f32.gmra.mrb[0].mxu0 %v19
  %v209 = vpop.f32.mrb[0].mxu0
  %v210 = vadd.f32 %v140, %v209
  %v211 = vpop.f32.mrb[0].mxu0
  %212 = vdwg.mxu0
  %v213 = vmax.f32 %v210, 0.0
  %v214 = vld [vmem:[%s2] sm:$0xff]
  %v215 = vld [vmem:[%s2 + $0x8] sm:$0xff]
  %v216 = vld [vmem:[%s2 + $0x10] sm:$0xff]
  %v217 = vld [vmem:[%s2 + $0x18] sm:$0xff]
  %v218 = vld [vmem:[%s2 + $0x20] sm:$0xf]
  %v219 = vld [vmem:[%s3 + $0x1] sm:$0x1]
  %v220 = vlaneseq
  %v221 = vshrl.u32 %v220, 7
  %v222 = vsub.s32 0, %v221
  %v223 = vrot.slane %v219, %v222
  %vm224 = vcmask 293888
  %v226 = vsel %vm224, %v213, 0
  %vm228 = vcmask 1043456
  %v230 = vsel %vm228, %v218, 0
  %232 = vmatprep.subr.mxu0 0.0
  %233 = vmatpush1.msra.mxu0 %v214
  %234 = vmatprep.subr.mxu0 0.0
  %235 = vmatpush1.msra.mxu0 %v215
  %236 = vmatprep.subr.mxu0 0.0
  %237 = vmatpush1.msra.mxu0 %v216
  %238 = vmatprep.subr.mxu0 0.0
  %239 = vmatpush1.msra.mxu0 %v217
  %240 = vmatprep.subr.mxu0 0.0
  %241 = vmatpush1.msra.mxu0 %v230
  %242 = vmatprep.subr.mxu0 0.0
  %243 = vmatpush1.msra.mxu0 0.0
  %244 = vmatprep.subr.mxu0 0.0
  %245 = vmatpush1.msra.mxu0 0.0
  %246 = vmatprep.subr.mxu0 0.0
  %247 = vmatpush1.msra.mxu0 0.0
  %248 = vmatprep.subr.mxu0 0.0
  %249 = vmatpush1.msra.mxu0 0.0
  %250 = vmatprep.subr.mxu0 0.0
  %251 = vmatpush1.msra.mxu0 0.0
  %252 = vmatprep.subr.mxu0 0.0
  %253 = vmatpush1.msra.mxu0 0.0
  %254 = vmatprep.subr.mxu0 0.0
  %255 = vmatpush1.msra.mxu0 0.0
  %256 = vmatprep.subr.mxu0 0.0
  %257 = vmatpush1.msra.mxu0 0.0
  %258 = vmatprep.subr.mxu0 0.0
  %259 = vmatpush1.msra.mxu0 0.0
  %260 = vmatprep.subr.mxu0 0.0
  %261 = vmatpush1.msra.mxu0 0.0
  %262 = vmatprep.subr.mxu0 0.0
  %263 = vmatpush1.msra.mxu0 0.0
  %264 = vmatprep.subr.mxu0 0.0
  %265 = vmatpush1.msra.mxu0 0.0
  %266 = vmatprep.subr.mxu0 0.0
  %267 = vmatpush1.msra.mxu0 0.0
  %268 = vmatprep.subr.mxu0 0.0
  %269 = vmatpush1.msra.mxu0 0.0
  %270 = vmatprep.subr.mxu0 0.0
  %271 = vmatpush1.msra.mxu0 0.0
  %272 = vmatprep.subr.mxu0 0.0
  %273 = vmatpush1.msra.mxu0 0.0
  %274 = vmatprep.subr.mxu0 0.0
  %275 = vmatpush1.msra.mxu0 0.0
  %276 = vmatprep.subr.mxu0 0.0
  %277 = vmatpush1.msra.mxu0 0.0
  %278 = vmatprep.subr.mxu0 0.0
  %279 = vmatpush1.msra.mxu0 0.0
  %280 = vmatprep.subr.mxu0 0.0
  %281 = vmatpush1.msra.mxu0 0.0
  %282 = vmatprep.subr.mxu0 0.0
  %283 = vmatpush1.msra.mxu0 0.0
  %284 = vmatprep.subr.mxu0 0.0
  %285 = vmatpush1.msra.mxu0 0.0
  %286 = vmatprep.subr.mxu0 0.0
  %287 = vmatpush1.msra.mxu0 0.0
  %288 = vmatprep.subr.mxu0 0.0
  %289 = vmatpush1.msra.mxu0 0.0
  %290 = vmatprep.subr.mxu0 0.0
  %291 = vmatpush1.msra.mxu0 0.0
  %292 = vmatprep.subr.mxu0 0.0
  %293 = vmatpush1.msra.mxu0 0.0
  %294 = vmatprep.subr.mxu0 0.0
  %295 = vmatpush1.msra.mxu0 0.0
  %296 = vmatprep.mubr.f32.mxu0 0.0
  %297 = vmatmul.mubr.f32.gmra.mrb[0].mxu0 %v226
  %v298 = vpop.f32.mrb[0].mxu0
  %v299 = vadd.f32 %v223, %v298
  %v300 = vpop.f32.mrb[0].mxu0
  %301 = vdwg.mxu0
  %v302 = vmax.f32 %v299, 0.0
  %s303 = scalar_lea.vmem %s2, 40
  %v304 = vld [vmem:[%s303] sm:$0xff]
  %v305 = vld [vmem:[%s303 + $0x8] sm:$0xff]
  %v306 = vld [vmem:[%s303 + $0x10] sm:$0xff]
  %v307 = vld [vmem:[%s303 + $0x18] sm:$0xff]
  %v308 = vld [vmem:[%s303 + $0x20] sm:$0xf]
  %v309 = vld [vmem:[%s3 + $0x2] sm:$0x1]
  %v310 = vlaneseq
  %v311 = vshrl.u32 %v310, 7
  %v312 = vsub.s32 0, %v311
  %v313 = vrot.slane %v309, %v312
  %v315 = vsel %vm224, %v302, 0
  %v318 = vsel %vm228, %v308, 0
  %320 = vmatprep.subr.mxu0 0.0
  %321 = vmatpush1.msra.mxu0 %v304
  %322 = vmatprep.subr.mxu0 0.0
  %323 = vmatpush1.msra.mxu0 %v305
  %324 = vmatprep.subr.mxu0 0.0
  %325 = vmatpush1.msra.mxu0 %v306
  %326 = vmatprep.subr.mxu0 0.0
  %327 = vmatpush1.msra.mxu0 %v307
  %328 = vmatprep.subr.mxu0 0.0
  %329 = vmatpush1.msra.mxu0 %v318
  %330 = vmatprep.subr.mxu0 0.0
  %331 = vmatpush1.msra.mxu0 0.0
  %332 = vmatprep.subr.mxu0 0.0
  %333 = vmatpush1.msra.mxu0 0.0
  %334 = vmatprep.subr.mxu0 0.0
  %335 = vmatpush1.msra.mxu0 0.0
  %336 = vmatprep.subr.mxu0 0.0
  %337 = vmatpush1.msra.mxu0 0.0
  %338 = vmatprep.subr.mxu0 0.0
  %339 = vmatpush1.msra.mxu0 0.0
  %340 = vmatprep.subr.mxu0 0.0
  %341 = vmatpush1.msra.mxu0 0.0
  %342 = vmatprep.subr.mxu0 0.0
  %343 = vmatpush1.msra.mxu0 0.0
  %344 = vmatprep.subr.mxu0 0.0
  %345 = vmatpush1.msra.mxu0 0.0
  %346 = vmatprep.subr.mxu0 0.0
  %347 = vmatpush1.msra.mxu0 0.0
  %348 = vmatprep.subr.mxu0 0.0
  %349 = vmatpush1.msra.mxu0 0.0
  %350 = vmatprep.subr.mxu0 0.0
  %351 = vmatpush1.msra.mxu0 0.0
  %352 = vmatprep.subr.mxu0 0.0
  %353 = vmatpush1.msra.mxu0 0.0
  %354 = vmatprep.subr.mxu0 0.0
  %355 = vmatpush1.msra.mxu0 0.0
  %356 = vmatprep.subr.mxu0 0.0
  %357 = vmatpush1.msra.mxu0 0.0
  %358 = vmatprep.subr.mxu0 0.0
  %359 = vmatpush1.msra.mxu0 0.0
  %360 = vmatprep.subr.mxu0 0.0
  %361 = vmatpush1.msra.mxu0 0.0
  %362 = vmatprep.subr.mxu0 0.0
  %363 = vmatpush1.msra.mxu0 0.0
  %364 = vmatprep.subr.mxu0 0.0
  %365 = vmatpush1.msra.mxu0 0.0
  %366 = vmatprep.subr.mxu0 0.0
  %367 = vmatpush1.msra.mxu0 0.0
  %368 = vmatprep.subr.mxu0 0.0
  %369 = vmatpush1.msra.mxu0 0.0
  %370 = vmatprep.subr.mxu0 0.0
  %371 = vmatpush1.msra.mxu0 0.0
  %372 = vmatprep.subr.mxu0 0.0
  %373 = vmatpush1.msra.mxu0 0.0
  %374 = vmatprep.subr.mxu0 0.0
  %375 = vmatpush1.msra.mxu0 0.0
  %376 = vmatprep.subr.mxu0 0.0
  %377 = vmatpush1.msra.mxu0 0.0
  %378 = vmatprep.subr.mxu0 0.0
  %379 = vmatpush1.msra.mxu0 0.0
  %380 = vmatprep.subr.mxu0 0.0
  %381 = vmatpush1.msra.mxu0 0.0
  %382 = vmatprep.subr.mxu0 0.0
  %383 = vmatpush1.msra.mxu0 0.0
  %384 = vmatprep.mubr.f32.mxu0 0.0
  %385 = vmatmul.mubr.f32.gmra.mrb[0].mxu0 %v315
  %v386 = vpop.f32.mrb[0].mxu0
  %v387 = vadd.f32 %v313, %v386
  %v388 = vpop.f32.mrb[0].mxu0
  %389 = vdwg.mxu0
  %v390 = vmax.f32 %v387, 0.0
  %s391 = scalar_lea.vmem %s2, 80
  %v392 = vld [vmem:[%s391] sm:$0xff]
  %v393 = vld [vmem:[%s391 + $0x8] sm:$0xff]
  %v394 = vld [vmem:[%s391 + $0x10] sm:$0xff]
  %v395 = vld [vmem:[%s391 + $0x18] sm:$0xff]
  %v396 = vld [vmem:[%s391 + $0x20] sm:$0xf]
  %v397 = vld [vmem:[%s3 + $0x3] sm:$0x1]
  %v398 = vlaneseq
  %v399 = vshrl.u32 %v398, 7
  %v400 = vsub.s32 0, %v399
  %v401 = vrot.slane %v397, %v400
  %v403 = vsel %vm224, %v390, 0
  %v406 = vsel %vm228, %v396, 0
  %408 = vmatprep.subr.mxu0 0.0
  %409 = vmatpush1.msra.mxu0 %v392
  %410 = vmatprep.subr.mxu0 0.0
  %411 = vmatpush1.msra.mxu0 %v393
  %412 = vmatprep.subr.mxu0 0.0
  %413 = vmatpush1.msra.mxu0 %v394
  %414 = vmatprep.subr.mxu0 0.0
  %415 = vmatpush1.msra.mxu0 %v395
  %416 = vmatprep.subr.mxu0 0.0
  %417 = vmatpush1.msra.mxu0 %v406
  %418 = vmatprep.subr.mxu0 0.0
  %419 = vmatpush1.msra.mxu0 0.0
  %420 = vmatprep.subr.mxu0 0.0
  %421 = vmatpush1.msra.mxu0 0.0
  %422 = vmatprep.subr.mxu0 0.0
  %423 = vmatpush1.msra.mxu0 0.0
  %424 = vmatprep.subr.mxu0 0.0
  %425 = vmatpush1.msra.mxu0 0.0
  %426 = vmatprep.subr.mxu0 0.0
  %427 = vmatpush1.msra.mxu0 0.0
  %428 = vmatprep.subr.mxu0 0.0
  %429 = vmatpush1.msra.mxu0 0.0
  %430 = vmatprep.subr.mxu0 0.0
  %431 = vmatpush1.msra.mxu0 0.0
  %432 = vmatprep.subr.mxu0 0.0
  %433 = vmatpush1.msra.mxu0 0.0
  %434 = vmatprep.subr.mxu0 0.0
  %435 = vmatpush1.msra.mxu0 0.0
  %436 = vmatprep.subr.mxu0 0.0
  %437 = vmatpush1.msra.mxu0 0.0
  %438 = vmatprep.subr.mxu0 0.0
  %439 = vmatpush1.msra.mxu0 0.0
  %440 = vmatprep.subr.mxu0 0.0
  %441 = vmatpush1.msra.mxu0 0.0
  %442 = vmatprep.subr.mxu0 0.0
  %443 = vmatpush1.msra.mxu0 0.0
  %444 = vmatprep.subr.mxu0 0.0
  %445 = vmatpush1.msra.mxu0 0.0
  %446 = vmatprep.subr.mxu0 0.0
  %447 = vmatpush1.msra.mxu0 0.0
  %448 = vmatprep.subr.mxu0 0.0
  %449 = vmatpush1.msra.mxu0 0.0
  %450 = vmatprep.subr.mxu0 0.0
  %451 = vmatpush1.msra.mxu0 0.0
  %452 = vmatprep.subr.mxu0 0.0
  %453 = vmatpush1.msra.mxu0 0.0
  %454 = vmatprep.subr.mxu0 0.0
  %455 = vmatpush1.msra.mxu0 0.0
  %456 = vmatprep.subr.mxu0 0.0
  %457 = vmatpush1.msra.mxu0 0.0
  %458 = vmatprep.subr.mxu0 0.0
  %459 = vmatpush1.msra.mxu0 0.0
  %460 = vmatprep.subr.mxu0 0.0
  %461 = vmatpush1.msra.mxu0 0.0
  %462 = vmatprep.subr.mxu0 0.0
  %463 = vmatpush1.msra.mxu0 0.0
  %464 = vmatprep.subr.mxu0 0.0
  %465 = vmatpush1.msra.mxu0 0.0
  %466 = vmatprep.subr.mxu0 0.0
  %467 = vmatpush1.msra.mxu0 0.0
  %468 = vmatprep.subr.mxu0 0.0
  %469 = vmatpush1.msra.mxu0 0.0
  %470 = vmatprep.subr.mxu0 0.0
  %471 = vmatpush1.msra.mxu0 0.0
  %472 = vmatprep.mubr.f32.mxu0 0.0
  %473 = vmatmul.mubr.f32.gmra.mrb[0].mxu0 %v403
  %v474 = vpop.f32.mrb[0].mxu0
  %v475 = vadd.f32 %v401, %v474
  %v476 = vpop.f32.mrb[0].mxu0
  %477 = vdwg.mxu0
  %vm478 = vcmask 15360
  %v479 = vsel %vm478, %v475, -inf
  %480 = vmax.xlane.f32.xlu0 %v479
  %v481 = vpop.xlane.xlu0 %480
  %v482 = vsub.f32 %v475, %v481
  %v483 = vmul.f32 %v482, 1.442695
  %v484 = vpow.pop %v483
  %v485 = vsel %vm478, %v484, 0.0
  %486 = vadd.xlane.f32.xlu0 %v485
  %v487 = vpop.xlane.xlu0 %486
  %v488 = vlog2.pop %v487
  %v489 = vmul.f32 %v488, 0.6931472
  %v490 = vsub.f32 %v482, %v489
  %491 = vst.msk [vmem:[%s4] sm:$0xff] %vm478, %v490
  // Predicated region
  $region18: #{nn4_forward.1} parent=0 // pred_check
    _
  $region19: #{nn4_forward.1} parent=0 // pred_check_branch
    %493 = sbr.rel (0) target = $region21
  $region20: #{nn4_forward.1} parent=0 // pred_region
    _
  $region21: #{nn4_forward.1} parent=0 // pred_fallthru
    _
  // Predicated region
  $region22: #{nn4_forward.1} parent=0 // pred_check
    _
  $region23: #{nn4_forward.1} parent=0 // pred_check_branch
    %495 = sbr.rel (0) target = $region25
  $region24: #{nn4_forward.1} parent=0 // pred_region
    _
  $region25: #{nn4_forward.1} parent=0 // pred_fallthru
    _

</llo_original>
